<compile_context>
chip_gen: v7x
topology: tpu7x:2x2x1
jax: 0.10.0
libtpu: 0.0.40
codegen_flags: <defaults>
</compile_context>

<pallas_src>
from collections import Counter

import numpy as np
import jax
import jax.numpy as jnp
from jax.experimental import pallas as pl
from jax.experimental.pallas import tpu as pltpu


# ------------------------------- Pallas kernel -------------------------------

def _sc_contrib_kernel(logp_ref, ei_ref, scores_ref, contrib_ref):
    """contrib[0, b] = scores[b] * sum_t (t < ei[b]) * logp[t, b].

    logp_ref:    (T, bb) f32 — batch on lanes, time on sublanes
    ei_ref:      (1, bb) i32 — per-example end index (first <end> + 1, else T)
    scores_ref:  (1, bb) f32 — per-example CIDEr advantage (scores_diff)
    contrib_ref: (1, bb) f32
    """
    logp = logp_ref[...]
    t_iota = jax.lax.broadcasted_iota(jnp.int32, logp.shape, 0)      # sublane (time) index
    mask = t_iota < ei_ref[...]                                      # (1,bb) broadcasts to (T,bb)
    masked_rowsum = jnp.sum(jnp.where(mask, logp, 0.0), axis=0, keepdims=True)  # (1, bb)
    contrib_ref[...] = scores_ref[...] * masked_rowsum


def _choose_block_b(b_padded, t, per_buffer_bytes=8 * 1024 * 1024):
    """Lane-axis tile: a multiple of 128 that divides b_padded, sized so the f32
    logp block is <= ~8 MiB (with double-buffering this stays well below the
    32 MiB scoped-VMEM default, which is the binding limit on v7x's 64 MiB VMEM)."""
    max_bb = max(128, (per_buffer_bytes // (4 * max(t, 1))) // 128 * 128)
    bb = min(b_padded, max_bb)
    while b_padded % bb != 0:
        bb -= 128
    return bb


def self_critical_accuracy(sample, sample_log_probs, scores_diff, end_token_id):
    """Returns (accuracy, advantage); the masked weighted reduction runs in Pallas."""
    B, T = sample.shape
    sample = sample.astype(jnp.int32)
    logp = sample_log_probs.astype(jnp.float32)        # keep f32 math (v5e: no bf16 VPU/EUP)
    scores = scores_diff.reshape(B).astype(jnp.float32)

    # Per-row end index (first <end> + 1, else T), computed in cheap XLA ops so the
    # kernel does not have to read the int32 token ids at all.
    hit = sample == jnp.int32(end_token_id)
    first = jnp.argmax(hit, axis=1).astype(jnp.int32)
    ei = jnp.where(jnp.any(hit, axis=1), first + jnp.int32(1), jnp.int32(T))   # (B,)

    # Lane-dense layout: batch on lanes, padded to full 128-lane vregs.
    # Padded lanes get ei=0 -> masked rowsum is exactly 0 -> contrib is exactly 0.
    Bp = ((B + 127) // 128) * 128
    pad = Bp - B
    logp_t = jnp.pad(logp.T, ((0, 0), (0, pad)))                     # (T, Bp)
    ei_row = jnp.pad(ei.reshape(1, B), ((0, 0), (0, pad)))           # (1, Bp) int32
    scores_row = jnp.pad(scores.reshape(1, B), ((0, 0), (0, pad)))   # (1, Bp) f32

    bb = _choose_block_b(Bp, T)
    grid = (Bp // bb,)

    contrib = pl.pallas_call(
        _sc_contrib_kernel,
        out_shape=jax.ShapeDtypeStruct((1, Bp), jnp.float32),
        grid_spec=pltpu.PrefetchScalarGridSpec(
            num_scalar_prefetch=0,
            grid=grid,
            in_specs=[pl.BlockSpec((T, bb), lambda i: (0, i)),
                      pl.BlockSpec((1, bb), lambda i: (0, i)),
                      pl.BlockSpec((1, bb), lambda i: (0, i))],
            out_specs=pl.BlockSpec((1, bb), lambda i: (0, i))),
        compiler_params=pltpu.CompilerParams(
            dimension_semantics=("parallel",)),   # independent B tiles; both TCs on v7x
    )(logp_t, ei_row, scores_row)

    num = jnp.sum(contrib)                          # padded lanes contribute exactly 0
    den = jnp.sum(ei.astype(jnp.float32))           # == mask.sum() (ei >= 1, never zero)
    accuracy = -num / den
    advantage = jnp.mean(scores)
    return accuracy, advantage


# ----------------------- host-side (non-Pallas) pieces -----------------------

def word_ids_to_words(ids, start_id, end_id, skip_start_token=True):
    """Minimal stand-in for the original vocab-based decoding."""
    res = {}
    for i, row in enumerate(np.asarray(ids)):
        words = []
        for t in row:
            t = int(t)
            if skip_start_token and t == start_id:
                continue
            if t == end_id:
                break
            words.append(f"w{t}")
        res[i] = [" ".join(words)]
    return res


def repetition(res):
    """Faithful port of SelfCriticalWithRepetitionLoss.repetition (host/string op)."""
    unigram, bigram, trigram, cuatrigram = Counter(), Counter(), Counter(), Counter()
    d1 = d2 = d3 = d4 = 0.0
    for _, b in res.items():
        cap = b[0].split()
        v_len = len(cap)
        unigram.update(cap)
        bigram.update([tuple(cap[i:i + 2]) for i in range(len(cap) - 1)])
        trigram.update([tuple(cap[i:i + 3]) for i in range(len(cap) - 2)])
        cuatrigram.update([tuple(cap[i:i + 4]) for i in range(len(cap) - 3)])
        d1 += float(((np.array(list(unigram.values()), np.float32) - 1) ** 2).sum() / v_len) if v_len > 0 else 0
        d2 += float(((np.array(list(bigram.values()), np.float32) - 1) ** 2).sum() / (v_len - 1)) if v_len > 1 else 0
        d3 += float(((np.array(list(trigram.values()), np.float32) - 1) ** 2).sum() / (v_len - 2)) if v_len > 2 else 0
        d4 += float(((np.array(list(cuatrigram.values()), np.float32) - 1) ** 2).sum() / (v_len - 3)) if v_len > 3 else 0
        unigram.clear(); bigram.clear(); trigram.clear(); cuatrigram.clear()
    return d1 * 0.1 + d2 + d3 + d4


def _reference_accuracy(sample, logp, scores, end_id):
    """Plain numpy reference of create_mask + accuracy (mirrors the torch code)."""
    sample = np.asarray(sample); logp = np.asarray(logp); scores = np.asarray(scores)
    B, T = sample.shape
    mask = np.zeros((B, T), np.float32)
    for i in range(B):
        nz = np.nonzero(sample[i] == end_id)[0]
        ei = int(nz[0]) + 1 if nz.size else T
        mask[i, :ei] = 1.0
    reward = np.repeat(scores[:, None], T, 1)
    acc = -(logp * reward * mask).sum() / mask.sum()
    return np.float32(acc), np.float32(scores.mean())


if __name__ == "__main__":
    key = jax.random.PRNGKey(0)
    ks = jax.random.split(key, 6)
    START_ID, END_ID = 1, 2

    # ---- case 1: the small captioning-like example ----
    B, T, V = 2, 8, 16
    sample = jax.random.randint(ks[0], (B, T), 3, V, dtype=jnp.int32)
    sample = sample.at[0, 5].set(END_ID)                          # row 1 has no <end>
    sample_log_probs = -jnp.abs(jax.random.normal(ks[1], (B, T), jnp.float32))
    # TODO(synk): CIDEr-D scorer is an external string-metric; use synthetic per-example
    # advantage (scores[:B] - scores[B:]) instead of running the real scorer.
    scores_diff = jax.random.normal(ks[2], (B,), jnp.float32)

    acc, adv = self_critical_accuracy(sample, sample_log_probs, scores_diff, END_ID)
    acc = jax.block_until_ready(acc)
    adv = jax.block_until_ready(adv)

    ref_acc, ref_adv = _reference_accuracy(sample, sample_log_probs, scores_diff, END_ID)
    np.testing.assert_allclose(np.asarray(acc), ref_acc, rtol=1e-5, atol=1e-5)
    np.testing.assert_allclose(np.asarray(adv), ref_adv, rtol=1e-5, atol=1e-5)

    # ---- case 2: exercises lane padding + mixed end positions ----
    B2, T2 = 5, 12
    sample2 = jax.random.randint(ks[3], (B2, T2), 3, V, dtype=jnp.int32)
    sample2 = sample2.at[0, 3].set(END_ID).at[2, 0].set(END_ID).at[4, T2 - 1].set(END_ID)
    logp2 = -jnp.abs(jax.random.normal(ks[4], (B2, T2), jnp.float32))
    scores2 = jax.random.normal(ks[5], (B2,), jnp.float32)

    acc2, adv2 = self_critical_accuracy(sample2, logp2, scores2, END_ID)
    acc2 = jax.block_until_ready(acc2)
    ref_acc2, ref_adv2 = _reference_accuracy(sample2, logp2, scores2, END_ID)
    np.testing.assert_allclose(np.asarray(acc2), ref_acc2, rtol=1e-5, atol=1e-5)
    np.testing.assert_allclose(np.asarray(adv2), ref_adv2, rtol=1e-5, atol=1e-5)

    # diversity term (string / Counter based -> host side, no Pallas equivalent)
    res_sample = word_ids_to_words(sample, START_ID, END_ID, skip_start_token=True)
    diversity = repetition(res_sample)

    loss = float(acc) + float(diversity)   # final scalar loss, as in the torch module
    _ = loss

    print("KERNEL_OK")
</pallas_src>

<mosaic_0001>
module attributes {stable_mosaic.version = 11 : i64} {
  func.func @_sc_contrib_kernel(%arg0: i32, %arg1: memref<8x128xf32, #tpu.memory_space<vmem>>, %arg2: memref<1x128xi32, #tpu.memory_space<vmem>>, %arg3: memref<1x128xf32, #tpu.memory_space<vmem>>, %arg4: memref<1x128xf32, #tpu.memory_space<vmem>>) attributes {dimension_semantics = [#tpu.dimension_semantics<parallel>], iteration_bounds = array<i64: 1>, scalar_prefetch = 0 : i64, scratch_operands = 0 : i64, tpu.core_type = #tpu.core_type<tc>, window_params = [{transform_indices = @transform_0, window_bounds = array<i64: 8, 128>}, {transform_indices = @transform_1, window_bounds = array<i64: 1, 128>}, {transform_indices = @transform_2, window_bounds = array<i64: 1, 128>}, {transform_indices = @transform_3, window_bounds = array<i64: 1, 128>}]} {
    %c0 = arith.constant 0 : index
    %c0_0 = arith.constant 0 : index
    %0 = vector.load %arg1[%c0, %c0_0] : memref<8x128xf32, #tpu.memory_space<vmem>>, vector<8x128xf32>
    %1 = tpu.iota {dimensions = array<i32: 0>} : vector<8x128xi32>
    %c0_1 = arith.constant 0 : index
    %c0_2 = arith.constant 0 : index
    %2 = vector.load %arg2[%c0_1, %c0_2] : memref<1x128xi32, #tpu.memory_space<vmem>>, vector<1x128xi32>
    %3 = vector.broadcast %2 : vector<1x128xi32> to vector<8x128xi32>
    %4 = arith.cmpi slt, %1, %3 : vector<8x128xi32>
    %cst = arith.constant 0.000000e+00 : f32
    %5 = vector.broadcast %cst : f32 to vector<8x128xf32>
    %6 = arith.select %4, %0, %5 : vector<8x128xi1>, vector<8x128xf32>
    %cst_3 = arith.constant dense<0.000000e+00> : vector<128xf32>
    %7 = vector.multi_reduction <add>, %6, %cst_3 [0] : vector<8x128xf32> to vector<128xf32>
    %8 = vector.shape_cast %7 : vector<128xf32> to vector<1x128xf32>
    %c0_4 = arith.constant 0 : index
    %c0_5 = arith.constant 0 : index
    %9 = vector.load %arg3[%c0_4, %c0_5] : memref<1x128xf32, #tpu.memory_space<vmem>>, vector<1x128xf32>
    %10 = arith.mulf %9, %8 : vector<1x128xf32>
    %c0_6 = arith.constant 0 : index
    %c0_7 = arith.constant 0 : index
    %11 = vector.load %arg4[%c0_6, %c0_7] : memref<1x128xf32, #tpu.memory_space<vmem>>, vector<1x128xf32>
    tpu.vector_store %arg4[%c0_6, %c0_7], %10 {strides = array<i32>} : memref<1x128xf32, #tpu.memory_space<vmem>>, vector<1x128xf32>,
    return
  }
  func.func @transform_0(%arg0: i32) -> (i32, i32) {
    %c0_i32 = arith.constant 0 : i32
    %c0_i32_0 = arith.constant 0 : i32
    return %c0_i32, %arg0 : i32, i32
  }
  func.func @transform_1(%arg0: i32) -> (i32, i32) {
    %c0_i32 = arith.constant 0 : i32
    %c0_i32_0 = arith.constant 0 : i32
    return %c0_i32, %arg0 : i32, i32
  }
  func.func @transform_2(%arg0: i32) -> (i32, i32) {
    %c0_i32 = arith.constant 0 : i32
    %c0_i32_0 = arith.constant 0 : i32
    return %c0_i32, %arg0 : i32, i32
  }
  func.func @transform_3(%arg0: i32) -> (i32, i32) {
    %c0_i32 = arith.constant 0 : i32
    %c0_i32_0 = arith.constant 0 : i32
    return %c0_i32, %arg0 : i32, i32
  }
}

</mosaic_0001>

<llo_original>
// kernel: tpu_custom_call.1
$region0: #{tpu_custom_call.1}
  #allocation0 [shape = 'u32[]', space=smem, size = 0x4, offset = 0x4, fixed_abs, tag = 'smem constant byte address 0x4 - core index']
  #allocation1 [shape = 'u32[144,128]{1,0:T(1,128)}', space=vmem, size = 0x12000, scoped, tag = 'internal scratch']
  %s0 = inlined_call_operand.hbm [shape: f32[8,128], index: 0, kind: input, shape index: {}]
  %s1 = inlined_call_operand.vmem [shape: s32[1,128], index: 1, kind: input, shape index: {}]
  %s2 = inlined_call_operand.vmem [shape: f32[1,128], index: 2, kind: input, shape index: {}]
  %s3 = inlined_call_operand.hbm [shape: f32[1,128], index: 3, kind: output, shape index: {}]
  %s4 = sld [smem:[#allocation0]]
  $region26: #{tpu_custom_call.1} parent=0
    _
  %s6 = ssub.s32 1, %s4
  %s7 = scalar_select 0, %s6, %s4
  $region1: #{tpu_custom_call.1} parent=0
    #allocation2 [shape = 'u8[4096]{0}', space=vmem, size = 0x1000, scoped, tag = 'input window, operand 0, single buffered']
    #allocation3 [shape = 's32[1]{0}', space=sflag, size = 0x4, scoped, tag = 'scoped memory for tpu_custom_call.1']
    #allocation4 [shape = 's32[1]{0}', space=sflag, size = 0x4, scoped, tag = 'scoped memory for tpu_custom_call.1']
    #allocation5 [shape = 'u8[512]{0}', space=vmem, size = 0x400, scoped, tag = 'output window, operand 0, single buffered']
    %8 = vsyncpa [#allocation3], 0
    %9 = vsyncpa [#allocation4], 0
    // Predicated region
    $region2: #{tpu_custom_call.1} parent=1 // pred_check
      _
    $region3: #{tpu_custom_call.1} parent=1 // pred_check_branch
      %11 = sbr.rel (0) target = $region5
    $region4: #{tpu_custom_call.1} parent=1 // pred_region
      %s13 = ssub.s32 128, 128
      %14 = vsyncadd [#allocation3], %s13
      %s16 = sshll.u32 [#allocation2], 4
      %s17 = int_to_ptr.vmem [resolvable:$true] %s16
      %19 = dma.hbm_to_vmem [thread:$0]  %s0, 128, %s17, [#allocation3]
    $region5: #{tpu_custom_call.1} parent=1 // pred_fallthru
      _
    // Predicated region
    $region6: #{tpu_custom_call.1} parent=1 // pred_check
      _
    $region7: #{tpu_custom_call.1} parent=1 // pred_check_branch
      %21 = sbr.rel (0) target = $region9
    $region8: #{tpu_custom_call.1} parent=1 // pred_region
      _
    $region9: #{tpu_custom_call.1} parent=1 // pred_fallthru
      _
    // Predicated region
    $region10: #{tpu_custom_call.1} parent=1 // pred_check
      _
    $region11: #{tpu_custom_call.1} parent=1 // pred_check_branch
      %23 = sbr.rel (0) target = $region13
    $region12: #{tpu_custom_call.1} parent=1 // pred_region
      _
    $region13: #{tpu_custom_call.1} parent=1 // pred_fallthru
      _
    // Predicated region
    $region14: #{tpu_custom_call.1} parent=1 // pred_check
      _
    $region15: #{tpu_custom_call.1} parent=1 // pred_check_branch
      %25 = sbr.rel (0) target = $region17
    $region16: #{tpu_custom_call.1} parent=1 // pred_region
      %26 = dma.done [#allocation3], 128
    $region17: #{tpu_custom_call.1} parent=1 // pred_fallthru
      _
    %v27 = vld [vmem:[#allocation2] sm:$0xff]
    %v28 = vlaneseq
    %v29 = vshrl.u32 %v28, 7
    %v30 = vld [vmem:[%s1] sm:$0x1]
    %v31 = vlaneseq
    %v32 = vshrl.u32 %v31, 7
    %v33 = vsub.s32 0, %v32
    %v34 = vrot.slane %v30, %v33
    %vm35 = vcmp.lt.s32.totalorder %v29, %v34
    %v36 = vsel %vm35, %v27, 0.0
    %v37 = vrot.slane %v36, 4
    %v38 = vadd.f32 %v36, %v37
    %v39 = vrot.slane %v38, 2
    %v40 = vadd.f32 %v38, %v39
    %v41 = vrot.slane %v40, 1
    %v42 = vadd.f32 %v40, %v41
    %v43 = vld [vmem:[%s2] sm:$0x1]
    %v44 = vmul.f32 %v43, %v42
    %45 = vst [vmem:[#allocation5] sm:$0x1] %v44
    // Predicated region
    $region18: #{tpu_custom_call.1} parent=1 // pred_check
      _
    $region19: #{tpu_custom_call.1} parent=1 // pred_check_branch
      %47 = sbr.rel (0) target = $region21
    $region20: #{tpu_custom_call.1} parent=1 // pred_region
      %s49 = ssub.s32 16, 16
      %50 = vsyncadd [#allocation4], %s49
      %s52 = sshll.u32 [#allocation5], 4
      %s53 = int_to_ptr.vmem [resolvable:$true] %s52
      %55 = dma.vmem_to_hbm [thread:$0]  %s53, 16, %s3, [#allocation4]
    $region21: #{tpu_custom_call.1} parent=1 // pred_fallthru
      _
    // Predicated region
    $region22: #{tpu_custom_call.1} parent=1 // pred_check
      _
    $region23: #{tpu_custom_call.1} parent=1 // pred_check_branch
      %57 = sbr.rel (0) target = $region25
    $region24: #{tpu_custom_call.1} parent=1 // pred_region
      %58 = dma.done [#allocation4], 16
    $region25: #{tpu_custom_call.1} parent=1 // pred_fallthru
      _
    %59 = vsyncpa [#allocation3], 1
    %60 = vsyncpa [#allocation4], 1

</llo_original>
